<compile_context>
chip_gen: v5e
topology: v5e:2x2
jax: 0.10.0
libtpu: 0.0.40
codegen_flags: <defaults>
</compile_context>

<pallas_src>
import functools

import jax
import jax.numpy as jnp
from jax.experimental import pallas as pl
from jax.experimental.pallas import tpu as pltpu


def _round_up(x, m):
    return ((x + m - 1) // m) * m


def _cdiv(a, b):
    return (a + b - 1) // b


def _focal_pow(base, gamma):
    """base**gamma with integer gamma specialised to VPU multiplies."""
    g = float(gamma)
    if g == 0.0:
        return jnp.ones_like(base)
    if g.is_integer() and 1.0 <= g <= 8.0:
        out = base
        for _ in range(int(g) - 1):
            out = out * base
        return out
    return jnp.power(base, g)


def _partial_scalar(vals):
    """Reduce a (rows, C) f32 block to a (1, 1) partial sum.

    Rows are tree-folded with plain vreg adds while the halves stay
    sublane-aligned (multiples of 8); the small remainder uses one reduce.
    """
    r = vals.shape[0]
    while r > 8 and r % 16 == 0:
        half = r // 2
        vals = vals[:half] + vals[half:]
        r = half
    p = jnp.sum(vals, axis=0, keepdims=True)          # (1, C)
    return jnp.sum(p, axis=-1, keepdims=True)         # (1, 1)


def _row_mask(x, rows_total):
    tile = x.shape[0]
    row_ids = pl.program_id(0) * tile + jax.lax.broadcasted_iota(
        jnp.int32, (tile, 1), 0)
    return row_ids < rows_total                        # (tile, 1) bool


def _labels_kernel(*refs, gamma, inv_temp, eps, from_logits, multilabel,
                   apply_temp, has_weights, rows_total, need_mask):
    """Integer-label path: one-hot built in-kernel, per-row scalar math."""
    if has_weights:
        x_ref, lbl_ref, w_ref, out_ref = refs
    else:
        x_ref, lbl_ref, out_ref = refs
        w_ref = None

    x = x_ref[...].astype(jnp.float32)                 # (tile, N)
    lbl = lbl_ref[...]                                 # (tile, 1) int32
    valid = None
    if need_mask:
        valid = _row_mask(x, rows_total)
        x = jnp.where(valid, x, 1.0)                   # keep log/exp finite on pad rows

    cols = jax.lax.broadcasted_iota(jnp.int32, x.shape, 1)
    onehot = cols == lbl                               # in-kernel one-hot

    if from_logits and not multilabel:
        # Softmax path: target is one-hot, so only logsumexp, z_t, p_t matter.
        z = x * inv_temp if apply_temp else x
        m = jnp.max(z, axis=-1, keepdims=True)
        zs = z - m
        e = jnp.exp(zs)
        s = jnp.sum(e, axis=-1, keepdims=True)         # (tile, 1)
        zs_t = jnp.sum(jnp.where(onehot, zs, 0.0), axis=-1, keepdims=True)
        norm_t = zs_t - jnp.log(s)                     # log_softmax at target
        soft_t = jnp.exp(zs_t) / s + eps               # softmax at target (exact)
    else:
        x_t = jnp.sum(jnp.where(onehot, x, 0.0), axis=-1, keepdims=True)
        if from_logits:                                # multilabel sigmoid
            e = jnp.exp(-jnp.abs(x_t))
            one_p = 1.0 + e
            norm_t = jnp.minimum(x_t, 0.0) - jnp.log(one_p)
            soft_t = jnp.where(x_t >= 0.0, 1.0 / one_p, e / one_p) + eps
        else:
            norm_t = jnp.log(x_t)
            soft_t = x_t + eps

    loss_col = -_focal_pow(1.0 - soft_t, gamma) * norm_t      # (tile, 1)
    if has_weights:
        w_t = jnp.sum(jnp.where(onehot, w_ref[...], 0.0), axis=-1, keepdims=True)
        loss_col = loss_col * w_t
    if need_mask:
        loss_col = jnp.where(valid, loss_col, 0.0)
    out_ref[...] = _partial_scalar(loss_col)[None]


def _dense_kernel(*refs, gamma, inv_temp, eps, from_logits, multilabel,
                  apply_temp, has_weights, rows_total, need_mask):
    """Dense (one-hot / binarised) target path."""
    if has_weights:
        x_ref, t_ref, w_ref, out_ref = refs
    else:
        x_ref, t_ref, out_ref = refs
        w_ref = None

    x = x_ref[...].astype(jnp.float32)
    t = t_ref[...].astype(jnp.float32)
    valid = None
    if need_mask:
        valid = _row_mask(x, rows_total)
        x = jnp.where(valid, x, 1.0)

    if from_logits:
        if multilabel:
            e = jnp.exp(-jnp.abs(x))                   # stable logsigmoid / sigmoid
            one_p = 1.0 + e
            input_norm = jnp.minimum(x, 0.0) - jnp.log(one_p)
            input_soft = jnp.where(x >= 0.0, 1.0 / one_p, e / one_p) + eps
        else:
            z = x * inv_temp if apply_temp else x
            m = jnp.max(z, axis=-1, keepdims=True)
            zs = z - m
            e = jnp.exp(zs)
            s = jnp.sum(e, axis=-1, keepdims=True)
            input_norm = zs - jnp.log(s)
            input_soft = e / s + eps                   # exact normalisation
    else:
        input_norm = jnp.log(x)
        input_soft = x + eps

    weighted = (-t) * _focal_pow(1.0 - input_soft, gamma) * input_norm
    if has_weights:
        weighted = weighted * w_ref[...]
    if need_mask:
        weighted = jnp.where(valid, weighted, 0.0)     # select drops pad-row NaN/inf
    out_ref[...] = _partial_scalar(weighted)[None]


def focal_loss(inputs, target, class_weights=None, *, gamma=1.0, temperature=1.0,
               from_logits=True, multilabel=False, reduction="mean",
               n_classes=None):
    """FocalLoss forward matching the PyTorch module (reduction='mean'/'sum')."""
    if reduction not in ("mean", "sum"):
        # TODO(synk): reduction='none' needs a per-example output layout; only
        # the reduced paths are wired through the Pallas kernel here.
        raise NotImplementedError("only 'mean'/'sum' reductions are implemented")

    N = inputs.shape[-1]
    if n_classes is not None and n_classes != N:
        raise ValueError(f"n_classes ({n_classes}) must match inputs.shape[-1] ({N})")

    x2d = inputs.reshape(-1, N)                # (B, N) or flattened (B*S, N)
    n_examples = x2d.shape[0]                  # mean denominator
    labels_mode = target.ndim < inputs.ndim
    has_weights = class_weights is not None
    w2d = (class_weights.reshape(1, N).astype(jnp.float32) if has_weights else None)

    if labels_mode:
        sec = target.reshape(-1, 1).astype(jnp.int32)
    else:
        sec = target.reshape(-1, N)

    # ---- lane packing for fully elementwise paths (multilabel / probabilities):
    # (B, N) -> (B*N/128, 128) is a free relabel of the same contiguous buffer
    # and recovers full VPU/EUP lane utilisation when N << 128.
    Ncols = N
    elementwise = multilabel or (not from_logits)
    if (not labels_mode) and elementwise and N < 128 and 128 % N == 0:
        k = 128 // N
        if n_examples % k == 0:
            Ncols = 128
            x2d = x2d.reshape(n_examples // k, 128)
            sec = sec.reshape(n_examples // k, 128)
            if has_weights:
                w2d = jnp.tile(w2d, (1, k))
    # TODO(synk): softmax paths could also be lane-packed with segmented row
    # reductions; not done here.

    rows = x2d.shape[0]

    # ---- tile selection: block-bytes target, bounded by a v7x-safe VMEM budget
    x_itemsize = jnp.dtype(x2d.dtype).itemsize
    lanes = _round_up(Ncols, 128)              # VMEM pads the lane dim to 128
    row_bytes_x = lanes * x_itemsize
    if labels_mode:
        row_bytes_sec = 128 * 4                # (tile,1) int32 pads lanes to 128
    else:
        row_bytes_sec = lanes * jnp.dtype(sec.dtype).itemsize
    # 2x double-buffered inputs + ~6 live (tile, lanes) f32 intermediates
    per_row_vmem = 2 * row_bytes_x + 2 * row_bytes_sec + 6 * lanes * 4

    VMEM_BUDGET = 24 << 20                     # safe on v7x (64 MiB physical per TC)
    TARGET_BLOCK_BYTES = 4 << 20               # ~1-4 MiB logits block per grid step

    if rows <= 8:
        tile = rows                            # block equals full array dims
    else:
        tile = min(VMEM_BUDGET // per_row_vmem,
                   max(8, TARGET_BLOCK_BYTES // row_bytes_x))
        if rows >= 16:
            # keep >=2 grid steps so "parallel" can split across v7x's two TCs
            tile = min(tile, _round_up(_cdiv(rows, 2), 8))
        tile = min(tile, max(8, (rows // 8) * 8))
        if tile >= 2048:
            tile = (tile // 1024) * 1024       # power-of-two-ish -> cheap row folds
        else:
            tile = max(8, (tile // 8) * 8)
    num_tiles = _cdiv(rows, tile)
    need_mask = (rows % tile) != 0
    vmem_limit = int(min(56 << 20, max(24 << 20, 2 * per_row_vmem * tile)))

    static = dict(gamma=float(gamma), inv_temp=1.0 / float(temperature),
                  apply_temp=(float(temperature) != 1.0), eps=1e-6,
                  from_logits=bool(from_logits), multilabel=bool(multilabel),
                  has_weights=has_weights, rows_total=rows, need_mask=need_mask)
    kernel = functools.partial(_labels_kernel if labels_mode else _dense_kernel,
                               **static)

    in_specs = [pl.BlockSpec((tile, Ncols), lambda i: (i, 0))]   # logits, native dtype
    args = [x2d]
    if labels_mode:
        in_specs.append(pl.BlockSpec((tile, 1), lambda i: (i, 0)))
    else:
        in_specs.append(pl.BlockSpec((tile, Ncols), lambda i: (i, 0)))
    args.append(sec)
    if has_weights:
        in_specs.append(pl.BlockSpec((1, Ncols), lambda i: (0, 0)))
        args.append(w2d)

    out = pl.pallas_call(
        kernel,
        out_shape=jax.ShapeDtypeStruct((num_tiles, 1, 1), jnp.float32),
        grid_spec=pltpu.PrefetchScalarGridSpec(
            num_scalar_prefetch=0,
            grid=(num_tiles,),
            in_specs=in_specs,
            out_specs=pl.BlockSpec((1, 1, 1), lambda i: (i, 0, 0)),
        ),
        compiler_params=pltpu.CompilerParams(
            dimension_semantics=("parallel",),     # independent per-tile partials
            vmem_limit_bytes=vmem_limit),
    )(*args)

    total = jnp.sum(out)                           # tiny final reduction in JAX
    if reduction == "mean":
        return total / jnp.float32(n_examples)
    return total


# ----------------------------- pure-JAX reference -----------------------------
def _reference(inputs, target, class_weights=None, *, gamma=1.0, temperature=1.0,
               from_logits=True, multilabel=False, eps=1e-6):
    inputs = inputs.astype(jnp.float32)
    N = inputs.shape[-1]
    if target.ndim < inputs.ndim:
        target = jax.nn.one_hot(target, N, dtype=jnp.float32)
    target = target.astype(jnp.float32)
    if from_logits:
        if multilabel:
            input_norm = jax.nn.log_sigmoid(inputs)
            input_soft = jax.nn.sigmoid(inputs) + eps
        else:
            z = inputs / temperature
            input_norm = jax.nn.log_softmax(z, axis=-1)
            input_soft = jax.nn.softmax(z, axis=-1) + eps
    else:
        input_norm = jnp.log(inputs)
        input_soft = inputs + eps
    if class_weights is None:
        class_weights = jnp.ones((N,), jnp.float32)
    fw = -target * jnp.power(1.0 - input_soft, gamma) * input_norm
    per_row = jnp.sum(fw * class_weights, axis=-1)
    return jnp.mean(per_row)


if __name__ == "__main__":
    key = jax.random.PRNGKey(0)
    k1, k2, k3, k4, k5, k6 = jax.random.split(key, 6)

    batch, n_classes = 8, 32
    logits = jax.random.normal(k1, (batch, n_classes), jnp.float32)
    labels = jax.random.randint(k2, (batch,), 0, n_classes)
    class_weights = jnp.ones((n_classes,), jnp.float32)   # torch.ones(n_classes) default

    # (1) integer-label softmax path: in-kernel one-hot, per-row scalar math
    loss = jax.block_until_ready(
        focal_loss(logits, labels, class_weights, gamma=1.0, temperature=1.0,
                   n_classes=n_classes))
    ref = _reference(logits, labels, class_weights, gamma=1.0, temperature=1.0)
    assert jnp.allclose(loss, ref, rtol=2e-3, atol=2e-3), (loss, ref)

    # (2) dense one-hot target path, gamma=2 (integer-pow), temperature=2
    onehot = jax.nn.one_hot(labels, n_classes, dtype=jnp.float32)
    loss2 = jax.block_until_ready(
        focal_loss(logits, onehot, class_weights, gamma=2.0, temperature=2.0,
                   n_classes=n_classes))
    ref2 = _reference(logits, onehot, class_weights, gamma=2.0, temperature=2.0)
    assert jnp.allclose(loss2, ref2, rtol=2e-3, atol=2e-3), (loss2, ref2)

    # (3) multilabel path, bf16 logits kept bf16 in HBM, lane-packed to 128
    logits_bf16 = jax.random.normal(k3, (batch, n_classes), jnp.float32).astype(jnp.bfloat16)
    multi_t = (jax.random.uniform(k4, (batch, n_classes)) > 0.8).astype(jnp.float32)
    loss3 = jax.block_until_ready(
        focal_loss(logits_bf16, multi_t, class_weights, gamma=1.0, multilabel=True,
                   n_classes=n_classes))
    ref3 = _reference(logits_bf16.astype(jnp.float32), multi_t, class_weights,
                      gamma=1.0, multilabel=True)
    assert jnp.allclose(loss3, ref3, rtol=2e-3, atol=2e-3), (loss3, ref3)

    # (4) NER-shaped input (B, S, N) with integer labels and a partial last tile
    #     (exercises the in-kernel row masking instead of HBM padding)
    ner_logits = jax.random.normal(k5, (2, 5, n_classes), jnp.float32)
    ner_labels = jax.random.randint(k6, (2, 5), 0, n_classes)
    loss4 = jax.block_until_ready(
        focal_loss(ner_logits, ner_labels, class_weights, gamma=1.0,
                   n_classes=n_classes))
    ref4 = _reference(ner_logits, ner_labels, class_weights, gamma=1.0)
    assert jnp.allclose(loss4, ref4, rtol=2e-3, atol=2e-3), (loss4, ref4)

    print("KERNEL_OK")
</pallas_src>

<mosaic_0001>
module attributes {stable_mosaic.version = 11 : i64} {
  func.func @_labels_kernel(%arg0: i32, %arg1: memref<8x32xf32, #tpu.memory_space<vmem>>, %arg2: memref<8x1xi32, #tpu.memory_space<vmem>>, %arg3: memref<1x32xf32, #tpu.memory_space<vmem>>, %arg4: memref<1x1x1xf32, #tpu.memory_space<vmem>>) attributes {dimension_semantics = [#tpu.dimension_semantics<parallel>], iteration_bounds = array<i64: 1>, scalar_prefetch = 0 : i64, scratch_operands = 0 : i64, tpu.core_type = #tpu.core_type<tc>, window_params = [{transform_indices = @transform_0, window_bounds = array<i64: 8, 32>}, {transform_indices = @transform_1, window_bounds = array<i64: 8, 1>}, {pipeline_mode = #tpu.pipeline_mode<synchronous>, transform_indices = @transform_2, window_bounds = array<i64: 1, 32>}, {transform_indices = @transform_3, window_bounds = array<i64: 1, 1, 1>}]} {
    %c0 = arith.constant 0 : index
    %c0_0 = arith.constant 0 : index
    %0 = vector.load %arg1[%c0, %c0_0] : memref<8x32xf32, #tpu.memory_space<vmem>>, vector<8x32xf32>
    %c0_1 = arith.constant 0 : index
    %c0_2 = arith.constant 0 : index
    %1 = vector.load %arg2[%c0_1, %c0_2] : memref<8x1xi32, #tpu.memory_space<vmem>>, vector<8x1xi32>
    %2 = tpu.iota {dimensions = array<i32: 1>} : vector<8x32xi32>
    %3 = vector.broadcast %1 : vector<8x1xi32> to vector<8x32xi32>
    %4 = arith.cmpi eq, %2, %3 : vector<8x32xi32>
    %cst = arith.constant dense<0xFF800000> : vector<8xf32>
    %5 = vector.multi_reduction <maximumf>, %0, %cst [1] : vector<8x32xf32> to vector<8xf32>
    %6 = vector.shape_cast %5 : vector<8xf32> to vector<8x1xf32>
    %7 = vector.broadcast %6 : vector<8x1xf32> to vector<8x32xf32>
    %8 = arith.subf %0, %7 : vector<8x32xf32>
    %9 = math.exp %8 : vector<8x32xf32>
    %cst_3 = arith.constant dense<0.000000e+00> : vector<8xf32>
    %10 = vector.multi_reduction <add>, %9, %cst_3 [1] : vector<8x32xf32> to vector<8xf32>
    %11 = vector.shape_cast %10 : vector<8xf32> to vector<8x1xf32>
    %cst_4 = arith.constant 0.000000e+00 : f32
    %12 = vector.broadcast %cst_4 : f32 to vector<8x32xf32>
    %13 = arith.select %4, %8, %12 : vector<8x32xi1>, vector<8x32xf32>
    %cst_5 = arith.constant dense<0.000000e+00> : vector<8xf32>
    %14 = vector.multi_reduction <add>, %13, %cst_5 [1] : vector<8x32xf32> to vector<8xf32>
    %15 = vector.shape_cast %14 : vector<8xf32> to vector<8x1xf32>
    %16 = math.log %11 : vector<8x1xf32>
    %17 = arith.subf %15, %16 : vector<8x1xf32>
    %18 = math.exp %15 : vector<8x1xf32>
    %19 = arith.divf %18, %11 : vector<8x1xf32>
    %cst_6 = arith.constant 9.99999997E-7 : f32
    %20 = vector.broadcast %cst_6 : f32 to vector<8x1xf32>
    %21 = arith.addf %19, %20 : vector<8x1xf32>
    %cst_7 = arith.constant 1.000000e+00 : f32
    %22 = vector.broadcast %cst_7 : f32 to vector<8x1xf32>
    %23 = arith.subf %22, %21 : vector<8x1xf32>
    %cst_8 = arith.constant 0.000000e+00 : f32
    %24 = vector.broadcast %cst_8 : f32 to vector<8x1xf32>
    %25 = arith.subf %24, %23 : vector<8x1xf32>
    %26 = arith.mulf %25, %17 : vector<8x1xf32>
    %c0_9 = arith.constant 0 : index
    %c0_10 = arith.constant 0 : index
    %27 = vector.load %arg3[%c0_9, %c0_10] : memref<1x32xf32, #tpu.memory_space<vmem>>, vector<1x32xf32>
    %cst_11 = arith.constant 0.000000e+00 : f32
    %28 = vector.shape_cast %27 : vector<1x32xf32> to vector<1x32xf32>
    %29 = vector.broadcast %28 : vector<1x32xf32> to vector<8x32xf32>
    %30 = vector.broadcast %cst_11 : f32 to vector<8x32xf32>
    %31 = arith.select %4, %29, %30 : vector<8x32xi1>, vector<8x32xf32>
    %cst_12 = arith.constant dense<0.000000e+00> : vector<8xf32>
    %32 = vector.multi_reduction <add>, %31, %cst_12 [1] : vector<8x32xf32> to vector<8xf32>
    %33 = vector.shape_cast %32 : vector<8xf32> to vector<8x1xf32>
    %34 = arith.mulf %26, %33 : vector<8x1xf32>
    %cst_13 = arith.constant dense<0.000000e+00> : vector<1xf32>
    %35 = vector.multi_reduction <add>, %34, %cst_13 [0] : vector<8x1xf32> to vector<1xf32>
    %36 = vector.shape_cast %35 : vector<1xf32> to vector<1x1xf32>
    %cst_14 = arith.constant dense<0.000000e+00> : vector<1xf32>
    %37 = vector.multi_reduction <add>, %36, %cst_14 [1] : vector<1x1xf32> to vector<1xf32>
    %38 = vector.shape_cast %37 : vector<1xf32> to vector<1x1xf32>
    %39 = vector.shape_cast %38 : vector<1x1xf32> to vector<1x1x1xf32>
    %c0_15 = arith.constant 0 : index
    %c0_16 = arith.constant 0 : index
    %c0_17 = arith.constant 0 : index
    %40 = vector.load %arg4[%c0_15, %c0_16, %c0_17] : memref<1x1x1xf32, #tpu.memory_space<vmem>>, vector<1x1x1xf32>
    tpu.vector_store %arg4[%c0_15, %c0_16, %c0_17], %39 {strides = array<i32>} : memref<1x1x1xf32, #tpu.memory_space<vmem>>, vector<1x1x1xf32>,
    return
  }
  func.func @transform_0(%arg0: i32) -> (i32, i32) {
    %c0_i32 = arith.constant 0 : i32
    %c0_i32_0 = arith.constant 0 : i32
    return %arg0, %c0_i32 : i32, i32
  }
  func.func @transform_1(%arg0: i32) -> (i32, i32) {
    %c0_i32 = arith.constant 0 : i32
    %c0_i32_0 = arith.constant 0 : i32
    return %arg0, %c0_i32 : i32, i32
  }
  func.func @transform_2(%arg0: i32) -> (i32, i32) {
    %c0_i32 = arith.constant 0 : i32
    %c0_i32_0 = arith.constant 0 : i32
    %c0_i32_1 = arith.constant 0 : i32
    return %c0_i32, %c0_i32_0 : i32, i32
  }
  func.func @transform_3(%arg0: i32) -> (i32, i32, i32) {
    %c0_i32 = arith.constant 0 : i32
    %c0_i32_0 = arith.constant 0 : i32
    %c0_i32_1 = arith.constant 0 : i32
    return %arg0, %c0_i32, %c0_i32_0 : i32, i32, i32
  }
}

</mosaic_0001>

<llo_original>
// kernel: tpu_custom_call.1
$region0: #{tpu_custom_call.1}
  #allocation0 [shape = 'u32[]', space=smem, size = 0x4, offset = 0x4, fixed_abs, tag = 'smem constant byte address 0x4 - core index']
  #allocation1 [shape = 'u32[72,128]{1,0:T(1,128)}', space=vmem, size = 0x9000, scoped, tag = 'internal scratch']
  %s0 = inlined_call_operand.vmem [shape: f32[8,32], index: 0, kind: input, shape index: {}]
  %s1 = inlined_call_operand.vmem [shape: s32[8,1], index: 1, kind: input, shape index: {}]
  %s2 = inlined_call_operand.vmem [shape: f32[1,32], index: 2, kind: input, shape index: {}]
  %s3 = inlined_call_operand.hbm [shape: f32[1,1,1], index: 3, kind: output, shape index: {}]
  %s4 = sld [smem:[#allocation0]]
  $region22: #{tpu_custom_call.1} parent=0
    _
  %s6 = ssub.s32 1, %s4
  %s7 = scalar_select 0, %s6, %s4
  $region1: #{tpu_custom_call.1} parent=0
    #allocation2 [shape = 'u8[512]{0}', space=vmem, size = 0x400, scoped, tag = 'output window, operand 0, single buffered']
    #allocation3 [shape = 's32[1]{0}', space=sflag, size = 0x4, scoped, tag = 'scoped memory for tpu_custom_call.1']
    %8 = vsyncpa [#allocation3], 0
    // Predicated region
    $region2: #{tpu_custom_call.1} parent=1 // pred_check
      _
    $region3: #{tpu_custom_call.1} parent=1 // pred_check_branch
      %10 = sbr.rel (0) target = $region5
    $region4: #{tpu_custom_call.1} parent=1 // pred_region
      _
    $region5: #{tpu_custom_call.1} parent=1 // pred_fallthru
      _
    // Predicated region
    $region6: #{tpu_custom_call.1} parent=1 // pred_check
      _
    $region7: #{tpu_custom_call.1} parent=1 // pred_check_branch
      %12 = sbr.rel (0) target = $region9
    $region8: #{tpu_custom_call.1} parent=1 // pred_region
      _
    $region9: #{tpu_custom_call.1} parent=1 // pred_fallthru
      _
    // Predicated region
    $region10: #{tpu_custom_call.1} parent=1 // pred_check
      _
    $region11: #{tpu_custom_call.1} parent=1 // pred_check_branch
      %14 = sbr.rel (0) target = $region13
    $region12: #{tpu_custom_call.1} parent=1 // pred_region
      _
    $region13: #{tpu_custom_call.1} parent=1 // pred_fallthru
      _
    %v15 = vld [vmem:[%s0] sm:$0xff]
    %v16 = vld [vmem:[%s1] sm:$0xff]
    %v17 = vlaneseq
    %v18 = vand.u32 %v17, 127
    %19 = vset.pattern.permute.xlu0 0
    %20 = vperm.xlu0 %19, %v16
    %v21 = vpop.permute.xlu0 %20
    %vm22 = vcmp.eq.s32.totalorder %v18, %v21
    %vm23 = vcmask 261120
    %v24 = vsel %vm23, %v15, -inf
    %25 = vmax.xlane.f32.xlu0 %v24
    %v26 = vpop.xlane.xlu0 %25
    %v27 = vsub.f32 %v15, %v26
    %v28 = vmul.f32 %v27, 1.442695
    %v29 = vpow.pop %v28
    %v30 = vsel %vm23, %v29, 0.0
    %31 = vadd.xlane.f32.xlu0 %v30
    %v32 = vpop.xlane.xlu0 %31
    %v33 = vsel %vm22, %v27, 0.0
    %v34 = vsel %vm23, %v33, 0.0
    %35 = vadd.xlane.f32.xlu0 %v34
    %v36 = vpop.xlane.xlu0 %35
    %v37 = vlog2.pop %v32
    %v38 = vmul.f32 %v37, 0.6931472
    %v39 = vsub.f32 %v36, %v38
    %v40 = vmul.f32 %v36, 1.442695
    %v41 = vpow.pop %v40
    %v42 = vrcp.pop %v32
    %v43 = vmul.f32 %v32, %v42
    %v44 = vsub.f32 1.0, %v43
    %v45 = vmul.f32 %v42, %v44
    %v46 = vadd.f32 %v42, %v45
    %vm47 = vweird.f32 %v32
    %vm48 = vweird.f32 %v42
    %vm49 = vmor %vm47, %vm48
    %v50 = vsel %vm49, %v42, %v46
    %v51 = vand.u32 2147483647, %v32
    %vm52 = vcmp.eq.f32.partialorder %v51, 8.507059e+37
    %v53 = vand.u32 %v32, 2147483648
    %v54 = vor.u32 1.1754944e-38, %v53
    %v55 = vsel %vm52, %v54, %v50
    %v56 = vmul.f32 %v41, %v55
    %v57 = vadd.f32 %v56, 1e-06
    %v58 = vsub.f32 1.0, %v57
    %v59 = vsub.f32 0.0, %v58
    %v60 = vmul.f32 %v59, %v39
    %v61 = vld [vmem:[%s2] sm:$0x1]
    %v63 = vperm.slane %v61, 0
    %v65 = vsel %vm22, %v63, 0.0
    %v66 = vsel %vm23, %v65, 0.0
    %67 = vadd.xlane.f32.xlu0 %v66
    %v68 = vpop.xlane.xlu0 %67
    %v69 = vmul.f32 %v60, %v68
    %v70 = vrot.slane %v69, 4
    %v71 = vadd.f32 %v69, %v70
    %v72 = vrot.slane %v71, 2
    %v73 = vadd.f32 %v71, %v72
    %v74 = vrot.slane %v73, 1
    %v75 = vadd.f32 %v73, %v74
    %v76 = vadd.f32 %v75, 0.0
    %vm77 = vcmask 0
    %78 = vst.msk [vmem:[#allocation2] sm:$0x1] %vm77, %v76
    // Predicated region
    $region14: #{tpu_custom_call.1} parent=1 // pred_check
      _
    $region15: #{tpu_custom_call.1} parent=1 // pred_check_branch
      %80 = sbr.rel (0) target = $region17
    $region16: #{tpu_custom_call.1} parent=1 // pred_region
      %82 = vsyncadd [#allocation3], 0
      %s84 = sshll.u32 [#allocation2], 4
      %s85 = int_to_ptr.vmem [resolvable:$true] %s84
      %s86 = sshll.u32 %s3, 4
      %s87 = int_to_ptr.hbm [resolvable:$true] %s86
      %89 = dma.vmem_to_hbm [thread:$0]  %s85, 16, %s87, [#allocation3]
    $region17: #{tpu_custom_call.1} parent=1 // pred_fallthru
      _
    // Predicated region
    $region18: #{tpu_custom_call.1} parent=1 // pred_check
      _
    $region19: #{tpu_custom_call.1} parent=1 // pred_check_branch
      %91 = sbr.rel (0) target = $region21
    $region20: #{tpu_custom_call.1} parent=1 // pred_region
      %93 = dma.done [#allocation3], 16
    $region21: #{tpu_custom_call.1} parent=1 // pred_fallthru
      _
    %94 = vsyncpa [#allocation3], 1

</llo_original>
